<compile_context>
chip_gen: v5e
topology: v5e:2x2
jax: 0.10.0
libtpu: 0.0.40
codegen_flags: <defaults>
</compile_context>

<pallas_src>
import jax
import jax.numpy as jnp
from jax.experimental import pallas as pl
from jax.experimental.pallas import tpu as pltpu


# ----------------------------------------------------------------------------
# Hardware-aware helpers
# ----------------------------------------------------------------------------
def _vmem_capacity_bytes():
    try:
        return int(pltpu.get_tpu_info().vmem_capacity_bytes)
    except Exception:
        return 128 * 1024 * 1024          # v5e / v6e default


def _vmem_limit_bytes():
    # ~48 MiB on v7x (64 MiB physical), ~96 MiB on v5e/v6e (128 MiB physical).
    return (_vmem_capacity_bytes() * 3) // 4


def _round_up(x, m):
    return ((x + m - 1) // m) * m


def _pick_tile(n, target, align):
    """Largest align-multiple tile <= target that divides n; else whole axis."""
    if n <= target:
        return n
    t = (target // align) * align
    while t >= align and n % t:
        t -= align
    return t if t >= align else n


# ----------------------------------------------------------------------------
# Tiled propagation kernel (large graphs): out = relu(A @ S)
#   A: (n_pad, n_pad) bf16, streamed once; S: (n_pad, f_pad) bf16 (hoisted
#   support, computed once per depth outside the kernel); f32 VMEM accumulator.
# ----------------------------------------------------------------------------
def _prop_relu_kernel(a_ref, s_ref, out_ref, acc_ref):
    k = pl.program_id(1)

    @pl.when(k == 0)
    def _init():
        acc_ref[...] = jnp.zeros_like(acc_ref)

    acc_ref[...] += jnp.dot(a_ref[...], s_ref[...],
                            preferred_element_type=jnp.float32)

    @pl.when(k == pl.num_programs(1) - 1)
    def _finalize():
        out_ref[...] = jnp.maximum(acc_ref[...], 0.0).astype(out_ref.dtype)


def propagate_relu_tiled(a_bf16, s_bf16, *, out_dtype=jnp.bfloat16):
    """relu(A @ S); n_pad and f_pad are multiples of 128."""
    n = a_bf16.shape[0]
    f = s_bf16.shape[1]

    # >=2 row tiles when possible so the parallel axis shards on v7x megacore.
    tm_target = min(2048, n // 2) if n >= 256 else n
    tm = _pick_tile(n, max(tm_target, 16), 16)     # 16-aligned (bf16 (16,128) tile)
    tk = _pick_tile(n, 1024, 128)                  # 128-aligned reduction tile
    grid = (n // tm, n // tk)

    flops = 2 * n * n * f
    bytes_accessed = (n * n * 2                    # A streamed once (bf16)
                      + (n // tm) * n * f * 2      # S re-read per row tile (bf16)
                      + n * f * jnp.dtype(out_dtype).itemsize)
    cost = pl.CostEstimate(flops=int(flops), transcendentals=0,
                           bytes_accessed=int(bytes_accessed))

    return pl.pallas_call(
        _prop_relu_kernel,
        out_shape=jax.ShapeDtypeStruct((n, f), out_dtype),
        grid_spec=pltpu.PrefetchScalarGridSpec(
            num_scalar_prefetch=0,
            grid=grid,
            in_specs=[
                pl.BlockSpec((tm, tk), lambda i, k: (i, k)),   # A tile
                pl.BlockSpec((tk, f), lambda i, k: (k, 0)),    # S K-rows
            ],
            out_specs=pl.BlockSpec((tm, f), lambda i, k: (i, 0)),
            scratch_shapes=[pltpu.VMEM((tm, f), jnp.float32)],
        ),
        compiler_params=pltpu.CompilerParams(
            dimension_semantics=("parallel", "arbitrary"),
            vmem_limit_bytes=_vmem_limit_bytes(),
        ),
        cost_estimate=cost,
    )(a_bf16, s_bf16)


# ----------------------------------------------------------------------------
# Fused VMEM-resident kernel (small graphs): A loaded once, all three depths
# computed in one pallas_call; intermediates stay in VMEM/vregs (f32).
# ----------------------------------------------------------------------------
def _fused_resident_kernel(a_ref, x0_ref, w1_ref, b1_ref, w2_ref, b2_ref,
                           w3_ref, b3_ref, h1_ref, h2_ref, h3_ref):
    a = a_ref[...]                                  # bf16 (n_pad, n_pad)

    def depth(x_in_f32, w_ref, b_ref, h_ref):
        s = jnp.dot(x_in_f32, w_ref[...],
                    preferred_element_type=jnp.float32) + b_ref[...]
        h = jnp.maximum(
            jnp.dot(a, s.astype(jnp.bfloat16),
                    preferred_element_type=jnp.float32),
            0.0)
        h_ref[...] = h.astype(h_ref.dtype)
        return h

    h1 = depth(x0_ref[...], w1_ref, b1_ref, h1_ref)
    h2 = depth(h1, w2_ref, b2_ref, h2_ref)
    depth(h2, w3_ref, b3_ref, h3_ref)


def _gcn3_fused_resident(a_bf16, x0, ws, bs):
    n = a_bf16.shape[0]
    f_in = x0.shape[1]
    f = ws[0].shape[1]

    flops = (2 * n * f_in * f + 2 * n * n * f) + 2 * (2 * n * f * f + 2 * n * n * f)
    bytes_accessed = (n * n * 2 + n * f_in * 4
                      + (f_in + 2 * f) * f * 4 + 3 * f * 4
                      + 3 * n * f * 4)
    cost = pl.CostEstimate(flops=int(flops), transcendentals=0,
                           bytes_accessed=int(bytes_accessed))

    vmem_spec = pl.BlockSpec(memory_space=pltpu.MemorySpace.VMEM)
    out_shape = tuple(jax.ShapeDtypeStruct((n, f), jnp.float32) for _ in range(3))
    return pl.pallas_call(
        _fused_resident_kernel,
        out_shape=out_shape,
        in_specs=[vmem_spec] * 8,
        out_specs=(vmem_spec,) * 3,
        compiler_params=pltpu.CompilerParams(
            vmem_limit_bytes=_vmem_limit_bytes()),
        cost_estimate=cost,
    )(a_bf16, x0, ws[0], bs[0], ws[1], bs[1], ws[2], bs[2])


# ----------------------------------------------------------------------------
# Glue: adjacency normalization (+padding), parameter init, block-diag fusion.
# ----------------------------------------------------------------------------
def normalized_adjacency(edge_index, n_nodes, n_pad=None):
    """A_hat = D^{-1/2} (A + I) D^{-1/2}, dense f32, zero-padded to n_pad."""
    src, dst = edge_index[0], edge_index[1]
    a = jnp.zeros((n_nodes, n_nodes), jnp.float32)
    a = a.at[src, dst].set(1.0)
    a = a.at[dst, src].set(1.0)                    # symmetrize
    a = a + jnp.eye(n_nodes, dtype=jnp.float32)    # self loops
    deg = jnp.sum(a, axis=1)
    d_inv_sqrt = jnp.where(deg > 0, 1.0 / jnp.sqrt(deg), 0.0)
    a = a * d_inv_sqrt[:, None] * d_inv_sqrt[None, :]
    if n_pad is not None and n_pad > n_nodes:
        pad = n_pad - n_nodes
        a = jnp.pad(a, ((0, pad), (0, pad)))       # zero pad: exact
    return a


def glorot_init(key, shape):
    fan_in, fan_out = shape
    limit = jnp.sqrt(6.0 / (fan_in + fan_out))
    return jax.random.uniform(key, shape, jnp.float32, -limit, limit)


def init_gcn3_params(key, n_features, n_graphfea, n_hid):
    dims = [
        (n_features, n_hid),  # conv1
        (n_hid, n_hid),       # conv2
        (n_hid, n_hid),       # conv3
        (n_graphfea, n_hid),  # conv4
        (n_hid, n_hid),       # conv5
        (n_hid, n_hid),       # conv6
    ]
    params = {}
    keys = jax.random.split(key, 2 * len(dims))
    for i, d in enumerate(dims, start=1):
        params[f"conv{i}_w"] = glorot_init(keys[2 * (i - 1)], d)
        # small non-zero bias so the bias/padding path is actually exercised
        params[f"conv{i}_b"] = 0.1 * jax.random.normal(
            keys[2 * i - 1], (1, d[1]), jnp.float32)
    return params


def _block_diag_padded(wq, wp, rows_pad, cols_pad):
    fq, hq = wq.shape
    fp, hp = wp.shape
    w = jnp.zeros((rows_pad, cols_pad), jnp.float32)
    w = w.at[:fq, :hq].set(wq)
    w = w.at[fq:fq + fp, hq:hq + hp].set(wp)
    return w


def _bias_padded(bq, bp, cols_pad):
    hq, hp = bq.shape[1], bp.shape[1]
    b = jnp.zeros((1, cols_pad), jnp.float32)
    b = b.at[:, :hq].set(bq)
    b = b.at[:, hq:hq + hp].set(bp)
    return b


# ----------------------------------------------------------------------------
# GCN3 forward
# ----------------------------------------------------------------------------
def gcn3_forward(params, x, view2, edge_index, d_inv, a_hat_pad_bf16=None, *,
                 force_tiled=False):
    del d_inv  # unused, signature parity with the PyTorch module
    n = x.shape[0]
    f_x = x.shape[1]
    f_v = view2.shape[1]
    h = params["conv1_w"].shape[1]

    n_pad = _round_up(n, 128)                 # lane/sublane-aligned node axis
    f_in0_pad = _round_up(f_x + f_v, 128)     # fused input-feature axis
    f_pad = _round_up(2 * h, 128)             # lane-dense fused output axis

    if a_hat_pad_bf16 is None:
        # TODO(synk): hoist A_hat construction (+ bf16 cast) outside jit when
        # the graph is static (the demo does this and passes it in).
        a_hat_pad_bf16 = normalized_adjacency(edge_index, n, n_pad).astype(jnp.bfloat16)

    # Padded fused input [x | view2 | 0].
    x0 = jnp.zeros((n_pad, f_in0_pad), jnp.float32)
    x0 = x0.at[:n, :f_x].set(x)
    x0 = x0.at[:n, f_x:f_x + f_v].set(view2)

    # Block-diagonal (zero-padded) fused weights / biases for each depth.
    w1 = _block_diag_padded(params["conv1_w"], params["conv4_w"], f_in0_pad, f_pad)
    b1 = _bias_padded(params["conv1_b"], params["conv4_b"], f_pad)
    w2 = _block_diag_padded(params["conv2_w"], params["conv5_w"], f_pad, f_pad)
    b2 = _bias_padded(params["conv2_b"], params["conv5_b"], f_pad)
    w3 = _block_diag_padded(params["conv3_w"], params["conv6_w"], f_pad, f_pad)
    b3 = _bias_padded(params["conv3_b"], params["conv6_b"], f_pad)

    # Generation-aware choice: fuse all three depths with A resident in VMEM
    # when it comfortably fits; otherwise stream A per depth with big tiles.
    resident_bytes = 2 * (                       # 2x slack for temporaries
        n_pad * n_pad * 2                        # A (bf16)
        + n_pad * f_in0_pad * 4                  # X0
        + (f_in0_pad + 2 * f_pad) * f_pad * 4    # weights
        + 4 * n_pad * f_pad * 4)                 # outputs + working set
    use_resident = (not force_tiled) and resident_bytes <= _vmem_limit_bytes() // 2

    if use_resident:
        h1, h2, h3 = _gcn3_fused_resident(a_hat_pad_bf16, x0,
                                          (w1, w2, w3), (b1, b2, b3))
    else:
        # Hoisted support: S = H W + b computed ONCE per depth (plain XLA),
        # cast to bf16 once; the Pallas kernel only streams A.
        # (Exact: A @ (XW + b) == A @ S with zero-padded A columns.)
        s1 = (jnp.dot(x0, w1, preferred_element_type=jnp.float32) + b1
              ).astype(jnp.bfloat16)
        h1 = propagate_relu_tiled(a_hat_pad_bf16, s1)
        s2 = (jnp.dot(h1.astype(jnp.float32), w2,
                      preferred_element_type=jnp.float32) + b2).astype(jnp.bfloat16)
        h2 = propagate_relu_tiled(a_hat_pad_bf16, s2)
        s3 = (jnp.dot(h2.astype(jnp.float32), w3,
                      preferred_element_type=jnp.float32) + b3).astype(jnp.bfloat16)
        h3 = propagate_relu_tiled(a_hat_pad_bf16, s3)

    q = jnp.concatenate([h1[:n, :h], h2[:n, :h], h3[:n, :h]],
                        axis=1).astype(jnp.float32)
    p = jnp.concatenate([h1[:n, h:2 * h], h2[:n, h:2 * h], h3[:n, h:2 * h]],
                        axis=1).astype(jnp.float32)
    return q, p


# Pure-JAX f32 reference (original per-layer, per-branch semantics).
def _gcn3_reference(params, x, view2, a_hat_f32):
    def layer(a, xin, w, b):
        return jnp.maximum(a @ (xin @ w + b), 0.0)
    x1 = layer(a_hat_f32, x, params["conv1_w"], params["conv1_b"])
    z1 = layer(a_hat_f32, x1, params["conv2_w"], params["conv2_b"])
    v1 = layer(a_hat_f32, z1, params["conv3_w"], params["conv3_b"])
    x2 = layer(a_hat_f32, view2, params["conv4_w"], params["conv4_b"])
    z2 = layer(a_hat_f32, x2, params["conv5_w"], params["conv5_b"])
    v2 = layer(a_hat_f32, z2, params["conv6_w"], params["conv6_b"])
    return (jnp.concatenate([x1, z1, v1], axis=1),
            jnp.concatenate([x2, z2, v2], axis=1))


# ----------------------------------------------------------------------------
# Demo
# ----------------------------------------------------------------------------
if __name__ == "__main__":
    def run_case(seed, n_nodes, n_feat, n_gfea, n_hid, n_edges, force_tiled):
        key = jax.random.PRNGKey(seed)
        k_x, k_v2, k_e, k_p = jax.random.split(key, 4)

        x = jax.random.normal(k_x, (n_nodes, n_feat), jnp.float32)
        view2 = jax.random.normal(k_v2, (n_nodes, n_gfea), jnp.float32)
        edge_index = jax.random.randint(k_e, (2, n_edges), 0, n_nodes, jnp.int32)
        d_inv = jnp.ones((n_nodes,), jnp.float32)      # unused, parity only
        params = init_gcn3_params(k_p, n_feat, n_gfea, n_hid)

        # Static graph -> build padded A_hat (bf16) once, outside jit.
        n_pad = _round_up(n_nodes, 128)
        a_hat_pad = normalized_adjacency(edge_index, n_nodes, n_pad)
        a_hat_pad_bf16 = a_hat_pad.astype(jnp.bfloat16)

        fwd = jax.jit(gcn3_forward, static_argnames=("force_tiled",))
        q, p = fwd(params, x, view2, edge_index, d_inv, a_hat_pad_bf16,
                   force_tiled=force_tiled)
        jax.block_until_ready((q, p))

        assert q.shape == (n_nodes, 3 * n_hid)
        assert p.shape == (n_nodes, 3 * n_hid)

        q_ref, p_ref = _gcn3_reference(params, x, view2,
                                       a_hat_pad[:n_nodes, :n_nodes])
        max_ref = max(float(jnp.max(jnp.abs(q_ref))),
                      float(jnp.max(jnp.abs(p_ref))))
        max_err = max(float(jnp.max(jnp.abs(q - q_ref))),
                      float(jnp.max(jnp.abs(p - p_ref))))
        tol = max(0.2, 0.02 * max_ref)     # bf16 A_hat / supports -> loose
        assert max_err < tol, f"max abs error {max_err} exceeds {tol}"

    # Small graph -> fused VMEM-resident single-kernel path (A loaded once).
    run_case(0, 16, 32, 16, 32, 40, force_tiled=False)
    # Medium graph, N not a multiple of 128 (zero-padded) -> tiled streaming path.
    run_case(1, 300, 48, 24, 48, 1200, force_tiled=True)

    print("KERNEL_OK")
</pallas_src>

<mosaic_0001>
module attributes {stable_mosaic.version = 11 : i64} {
  func.func @_fused_resident_kernel(%arg0: memref<128x128xbf16, #tpu.memory_space<vmem>>, %arg1: memref<128x128xf32, #tpu.memory_space<vmem>>, %arg2: memref<128x128xf32, #tpu.memory_space<vmem>>, %arg3: memref<1x128xf32, #tpu.memory_space<vmem>>, %arg4: memref<128x128xf32, #tpu.memory_space<vmem>>, %arg5: memref<1x128xf32, #tpu.memory_space<vmem>>, %arg6: memref<128x128xf32, #tpu.memory_space<vmem>>, %arg7: memref<1x128xf32, #tpu.memory_space<vmem>>, %arg8: memref<128x128xf32, #tpu.memory_space<vmem>>, %arg9: memref<128x128xf32, #tpu.memory_space<vmem>>, %arg10: memref<128x128xf32, #tpu.memory_space<vmem>>) attributes {dimension_semantics = [], scalar_prefetch = 0 : i64, scratch_operands = 0 : i64, tpu.core_type = #tpu.core_type<tc>} {
    %c0 = arith.constant 0 : index
    %c0_0 = arith.constant 0 : index
    %0 = vector.load %arg0[%c0, %c0_0] : memref<128x128xbf16, #tpu.memory_space<vmem>>, vector<128x128xbf16>
    %c0_1 = arith.constant 0 : index
    %c0_2 = arith.constant 0 : index
    %1 = vector.load %arg1[%c0_1, %c0_2] : memref<128x128xf32, #tpu.memory_space<vmem>>, vector<128x128xf32>
    %c0_3 = arith.constant 0 : index
    %c0_4 = arith.constant 0 : index
    %2 = vector.load %arg2[%c0_3, %c0_4] : memref<128x128xf32, #tpu.memory_space<vmem>>, vector<128x128xf32>
    %cst = arith.constant dense<0.000000e+00> : vector<128x128xf32>
    %3 = tpu.matmul %1, %2, %cst {dimension_numbers = #tpu.dot_dimension_numbers<[1], [0], [0], [1], [0, 0, 1, 1], [], []>} : vector<128x128xf32>, vector<128x128xf32>, vector<128x128xf32> -> vector<128x128xf32>
    %c0_5 = arith.constant 0 : index
    %c0_6 = arith.constant 0 : index
    %4 = vector.load %arg3[%c0_5, %c0_6] : memref<1x128xf32, #tpu.memory_space<vmem>>, vector<1x128xf32>
    %5 = vector.broadcast %4 : vector<1x128xf32> to vector<128x128xf32>
    %6 = arith.addf %3, %5 : vector<128x128xf32>
    %7 = arith.truncf %6 : vector<128x128xf32> to vector<128x128xbf16>
    %cst_7 = arith.constant dense<0.000000e+00> : vector<128x128xf32>
    %8 = tpu.matmul %0, %7, %cst_7 {dimension_numbers = #tpu.dot_dimension_numbers<[1], [0], [0], [1], [0, 0, 1, 1], [], []>} : vector<128x128xbf16>, vector<128x128xbf16>, vector<128x128xf32> -> vector<128x128xf32>
    %cst_8 = arith.constant 0.000000e+00 : f32
    %9 = vector.broadcast %cst_8 : f32 to vector<128x128xf32>
    %10 = arith.maximumf %8, %9 : vector<128x128xf32>
    %c0_9 = arith.constant 0 : index
    %c0_10 = arith.constant 0 : index
    %11 = vector.load %arg8[%c0_9, %c0_10] : memref<128x128xf32, #tpu.memory_space<vmem>>, vector<128x128xf32>
    tpu.vector_store %arg8[%c0_9, %c0_10], %10 {strides = array<i32>} : memref<128x128xf32, #tpu.memory_space<vmem>>, vector<128x128xf32>,
    %c0_11 = arith.constant 0 : index
    %c0_12 = arith.constant 0 : index
    %12 = vector.load %arg4[%c0_11, %c0_12] : memref<128x128xf32, #tpu.memory_space<vmem>>, vector<128x128xf32>
    %cst_13 = arith.constant dense<0.000000e+00> : vector<128x128xf32>
    %13 = tpu.matmul %10, %12, %cst_13 {dimension_numbers = #tpu.dot_dimension_numbers<[1], [0], [0], [1], [0, 0, 1, 1], [], []>} : vector<128x128xf32>, vector<128x128xf32>, vector<128x128xf32> -> vector<128x128xf32>
    %c0_14 = arith.constant 0 : index
    %c0_15 = arith.constant 0 : index
    %14 = vector.load %arg5[%c0_14, %c0_15] : memref<1x128xf32, #tpu.memory_space<vmem>>, vector<1x128xf32>
    %15 = vector.broadcast %14 : vector<1x128xf32> to vector<128x128xf32>
    %16 = arith.addf %13, %15 : vector<128x128xf32>
    %17 = arith.truncf %16 : vector<128x128xf32> to vector<128x128xbf16>
    %cst_16 = arith.constant dense<0.000000e+00> : vector<128x128xf32>
    %18 = tpu.matmul %0, %17, %cst_16 {dimension_numbers = #tpu.dot_dimension_numbers<[1], [0], [0], [1], [0, 0, 1, 1], [], []>} : vector<128x128xbf16>, vector<128x128xbf16>, vector<128x128xf32> -> vector<128x128xf32>
    %cst_17 = arith.constant 0.000000e+00 : f32
    %19 = vector.broadcast %cst_17 : f32 to vector<128x128xf32>
    %20 = arith.maximumf %18, %19 : vector<128x128xf32>
    %c0_18 = arith.constant 0 : index
    %c0_19 = arith.constant 0 : index
    %21 = vector.load %arg9[%c0_18, %c0_19] : memref<128x128xf32, #tpu.memory_space<vmem>>, vector<128x128xf32>
    tpu.vector_store %arg9[%c0_18, %c0_19], %20 {strides = array<i32>} : memref<128x128xf32, #tpu.memory_space<vmem>>, vector<128x128xf32>,
    %c0_20 = arith.constant 0 : index
    %c0_21 = arith.constant 0 : index
    %22 = vector.load %arg6[%c0_20, %c0_21] : memref<128x128xf32, #tpu.memory_space<vmem>>, vector<128x128xf32>
    %cst_22 = arith.constant dense<0.000000e+00> : vector<128x128xf32>
    %23 = tpu.matmul %20, %22, %cst_22 {dimension_numbers = #tpu.dot_dimension_numbers<[1], [0], [0], [1], [0, 0, 1, 1], [], []>} : vector<128x128xf32>, vector<128x128xf32>, vector<128x128xf32> -> vector<128x128xf32>
    %c0_23 = arith.constant 0 : index
    %c0_24 = arith.constant 0 : index
    %24 = vector.load %arg7[%c0_23, %c0_24] : memref<1x128xf32, #tpu.memory_space<vmem>>, vector<1x128xf32>
    %25 = vector.broadcast %24 : vector<1x128xf32> to vector<128x128xf32>
    %26 = arith.addf %23, %25 : vector<128x128xf32>
    %27 = arith.truncf %26 : vector<128x128xf32> to vector<128x128xbf16>
    %cst_25 = arith.constant dense<0.000000e+00> : vector<128x128xf32>
    %28 = tpu.matmul %0, %27, %cst_25 {dimension_numbers = #tpu.dot_dimension_numbers<[1], [0], [0], [1], [0, 0, 1, 1], [], []>} : vector<128x128xbf16>, vector<128x128xbf16>, vector<128x128xf32> -> vector<128x128xf32>
    %cst_26 = arith.constant 0.000000e+00 : f32
    %29 = vector.broadcast %cst_26 : f32 to vector<128x128xf32>
    %30 = arith.maximumf %28, %29 : vector<128x128xf32>
    %c0_27 = arith.constant 0 : index
    %c0_28 = arith.constant 0 : index
    %31 = vector.load %arg10[%c0_27, %c0_28] : memref<128x128xf32, #tpu.memory_space<vmem>>, vector<128x128xf32>
    tpu.vector_store %arg10[%c0_27, %c0_28], %30 {strides = array<i32>} : memref<128x128xf32, #tpu.memory_space<vmem>>, vector<128x128xf32>,
    return
  }
}

</mosaic_0001>

<llo_original>
// kernel: gcn3_forward.1
$region0: #{gcn3_forward.1}
  #allocation0 [shape = 'u32[]', space=smem, size = 0x4, offset = 0x4, fixed_abs, tag = 'smem constant byte address 0x4 - core index']
  #allocation1 [shape = 'u32[72,128]{1,0:T(1,128)}', space=vmem, size = 0x9000, scoped, tag = 'internal scratch']
  %s0 = inlined_call_operand.vmem [shape: bf16[128,128], index: 0, kind: input, shape index: {}]
  %s1 = inlined_call_operand.vmem [shape: f32[128,128], index: 1, kind: input, shape index: {}]
  %s2 = inlined_call_operand.vmem [shape: f32[128,128], index: 2, kind: input, shape index: {}]
  %s3 = inlined_call_operand.vmem [shape: f32[1,128], index: 3, kind: input, shape index: {}]
  %s4 = inlined_call_operand.vmem [shape: f32[128,128], index: 4, kind: input, shape index: {}]
  %s5 = inlined_call_operand.vmem [shape: f32[1,128], index: 5, kind: input, shape index: {}]
  %s6 = inlined_call_operand.vmem [shape: f32[128,128], index: 6, kind: input, shape index: {}]
  %s7 = inlined_call_operand.vmem [shape: f32[1,128], index: 7, kind: input, shape index: {}]
  %s8 = inlined_call_operand.vmem [shape: f32[128,128], index: 8, kind: output, shape index: {0}]
  %s9 = inlined_call_operand.vmem [shape: f32[128,128], index: 9, kind: output, shape index: {1}]
  %s10 = inlined_call_operand.vmem [shape: f32[128,128], index: 10, kind: output, shape index: {2}]
  %11 = xla_tuple %s8, %s9, %s10
  %s12 = sld [smem:[#allocation0]]
  $region58: #{gcn3_forward.1} parent=0
    _
  %s14 = ssub.s32 1, %s12
  %s15 = scalar_select 0, %s14, %s12
  // Predicated region
  $region2: #{gcn3_forward.1} parent=0 // pred_check
    _
  $region3: #{gcn3_forward.1} parent=0 // pred_check_branch
    %17 = sbr.rel (0) target = $region5
  $region4: #{gcn3_forward.1} parent=0 // pred_region
    _
  $region5: #{gcn3_forward.1} parent=0 // pred_fallthru
    _
  // Predicated region
  $region6: #{gcn3_forward.1} parent=0 // pred_check
    _
  $region7: #{gcn3_forward.1} parent=0 // pred_check_branch
    %19 = sbr.rel (0) target = $region9
  $region8: #{gcn3_forward.1} parent=0 // pred_region
    _
  $region9: #{gcn3_forward.1} parent=0 // pred_fallthru
    _
  // Predicated region
  $region10: #{gcn3_forward.1} parent=0 // pred_check
    _
  $region11: #{gcn3_forward.1} parent=0 // pred_check_branch
    %21 = sbr.rel (0) target = $region13
  $region12: #{gcn3_forward.1} parent=0 // pred_region
    _
  $region13: #{gcn3_forward.1} parent=0 // pred_fallthru
    _
  // Predicated region
  $region14: #{gcn3_forward.1} parent=0 // pred_check
    _
  $region15: #{gcn3_forward.1} parent=0 // pred_check_branch
    %23 = sbr.rel (0) target = $region17
  $region16: #{gcn3_forward.1} parent=0 // pred_region
    _
  $region17: #{gcn3_forward.1} parent=0 // pred_fallthru
    _
  // Predicated region
  $region18: #{gcn3_forward.1} parent=0 // pred_check
    _
  $region19: #{gcn3_forward.1} parent=0 // pred_check_branch
    %25 = sbr.rel (0) target = $region21
  $region20: #{gcn3_forward.1} parent=0 // pred_region
    _
  $region21: #{gcn3_forward.1} parent=0 // pred_fallthru
    _
  // Predicated region
  $region22: #{gcn3_forward.1} parent=0 // pred_check
    _
  $region23: #{gcn3_forward.1} parent=0 // pred_check_branch
    %27 = sbr.rel (0) target = $region25
  $region24: #{gcn3_forward.1} parent=0 // pred_region
    _
  $region25: #{gcn3_forward.1} parent=0 // pred_fallthru
    _
  // Predicated region
  $region26: #{gcn3_forward.1} parent=0 // pred_check
    _
  $region27: #{gcn3_forward.1} parent=0 // pred_check_branch
    %29 = sbr.rel (0) target = $region29
  $region28: #{gcn3_forward.1} parent=0 // pred_region
    _
  $region29: #{gcn3_forward.1} parent=0 // pred_fallthru
    _
  // Predicated region
  $region30: #{gcn3_forward.1} parent=0 // pred_check
    _
  $region31: #{gcn3_forward.1} parent=0 // pred_check_branch
    %31 = sbr.rel (0) target = $region33
  $region32: #{gcn3_forward.1} parent=0 // pred_region
    _
  $region33: #{gcn3_forward.1} parent=0 // pred_fallthru
    _
  %v32 = vld [vmem:[%s0] sm:$0xf]
  %v33 = vld [vmem:[%s0 + $0x4] sm:$0xf]
  %v34 = vld [vmem:[%s0 + $0x8] sm:$0xf]
  %v35 = vld [vmem:[%s0 + $0xc] sm:$0xf]
  %v36 = vld [vmem:[%s0 + $0x10] sm:$0xf]
  %v37 = vld [vmem:[%s0 + $0x14] sm:$0xf]
  %v38 = vld [vmem:[%s0 + $0x18] sm:$0xf]
  %v39 = vld [vmem:[%s0 + $0x1c] sm:$0xf]
  %v40 = vld [vmem:[%s0 + $0x20] sm:$0xf]
  %v41 = vld [vmem:[%s0 + $0x24] sm:$0xf]
  %v42 = vld [vmem:[%s0 + $0x28] sm:$0xf]
  %v43 = vld [vmem:[%s0 + $0x2c] sm:$0xf]
  %v44 = vld [vmem:[%s0 + $0x30] sm:$0xf]
  %v45 = vld [vmem:[%s0 + $0x34] sm:$0xf]
  %v46 = vld [vmem:[%s0 + $0x38] sm:$0xf]
  %v47 = vld [vmem:[%s0 + $0x3c] sm:$0xf]
  %v48 = vld [vmem:[%s1] sm:$0xff]
  %v49 = vld [vmem:[%s1 + $0x8] sm:$0xff]
  %v50 = vld [vmem:[%s1 + $0x10] sm:$0xff]
  %v51 = vld [vmem:[%s1 + $0x18] sm:$0xff]
  %v52 = vld [vmem:[%s1 + $0x20] sm:$0xff]
  %v53 = vld [vmem:[%s1 + $0x28] sm:$0xff]
  %v54 = vld [vmem:[%s1 + $0x30] sm:$0xff]
  %v55 = vld [vmem:[%s1 + $0x38] sm:$0xff]
  %v56 = vld [vmem:[%s1 + $0x40] sm:$0xff]
  %v57 = vld [vmem:[%s1 + $0x48] sm:$0xff]
  %v58 = vld [vmem:[%s1 + $0x50] sm:$0xff]
  %v59 = vld [vmem:[%s1 + $0x58] sm:$0xff]
  %v60 = vld [vmem:[%s1 + $0x60] sm:$0xff]
  %v61 = vld [vmem:[%s1 + $0x68] sm:$0xff]
  %v62 = vld [vmem:[%s1 + $0x70] sm:$0xff]
  %v63 = vld [vmem:[%s1 + $0x78] sm:$0xff]
  %v64 = vld [vmem:[%s2] sm:$0xff]
  %v65 = vld [vmem:[%s2 + $0x8] sm:$0xff]
  %v66 = vld [vmem:[%s2 + $0x10] sm:$0xff]
  %v67 = vld [vmem:[%s2 + $0x18] sm:$0xff]
  %v68 = vld [vmem:[%s2 + $0x20] sm:$0xff]
  %v69 = vld [vmem:[%s2 + $0x28] sm:$0xff]
  %v70 = vld [vmem:[%s2 + $0x30] sm:$0xff]
  %v71 = vld [vmem:[%s2 + $0x38] sm:$0xff]
  %v72 = vld [vmem:[%s2 + $0x40] sm:$0xff]
  %v73 = vld [vmem:[%s2 + $0x48] sm:$0xff]
  %v74 = vld [vmem:[%s2 + $0x50] sm:$0xff]
  %v75 = vld [vmem:[%s2 + $0x58] sm:$0xff]
  %v76 = vld [vmem:[%s2 + $0x60] sm:$0xff]
  %v77 = vld [vmem:[%s2 + $0x68] sm:$0xff]
  %v78 = vld [vmem:[%s2 + $0x70] sm:$0xff]
  %v79 = vld [vmem:[%s2 + $0x78] sm:$0xff]
  %v80 = vld [vmem:[%s3] sm:$0x1]
  %v82 = vperm.slane %v80, 0
  %84 = vmatpush.msra.mxu0 %v79
  %85 = vmatpush.msra.mxu0 %v78
  %86 = vmatpush.msra.mxu0 %v77
  %87 = vmatpush.msra.mxu0 %v76
  %88 = vmatpush.msra.mxu0 %v75
  %89 = vmatpush.msra.mxu0 %v74
  %90 = vmatpush.msra.mxu0 %v73
  %91 = vmatpush.msra.mxu0 %v72
  %92 = vmatpush.msra.mxu0 %v71
  %93 = vmatpush.msra.mxu0 %v70
  %94 = vmatpush.msra.mxu0 %v69
  %95 = vmatpush.msra.mxu0 %v68
  %96 = vmatpush.msra.mxu0 %v67
  %97 = vmatpush.msra.mxu0 %v66
  %98 = vmatpush.msra.mxu0 %v65
  %99 = vmatpush.msra.mxu0 %v64
  %100 = vmatmul.f32.gmra.mxu0 %v48
  %v101 = vpop.f32.mrf.mxu0
  %v102 = vadd.f32 %v82, %v101
  %103 = vmatmul.f32.gmra.mxu0 %v49
  %v104 = vpop.f32.mrf.mxu0
  %v105 = vadd.f32 %v82, %v104
  %106 = vmatmul.f32.gmra.mxu0 %v50
  %v107 = vpop.f32.mrf.mxu0
  %v108 = vadd.f32 %v82, %v107
  %109 = vmatmul.f32.gmra.mxu0 %v51
  %v110 = vpop.f32.mrf.mxu0
  %v111 = vadd.f32 %v82, %v110
  %112 = vmatmul.f32.gmra.mxu0 %v52
  %v113 = vpop.f32.mrf.mxu0
  %v114 = vadd.f32 %v82, %v113
  %115 = vmatmul.f32.gmra.mxu0 %v53
  %v116 = vpop.f32.mrf.mxu0
  %v117 = vadd.f32 %v82, %v116
  %118 = vmatmul.f32.gmra.mxu0 %v54
  %v119 = vpop.f32.mrf.mxu0
  %v120 = vadd.f32 %v82, %v119
  %121 = vmatmul.f32.gmra.mxu0 %v55
  %v122 = vpop.f32.mrf.mxu0
  %v123 = vadd.f32 %v82, %v122
  %124 = vmatmul.f32.gmra.mxu0 %v56
  %v125 = vpop.f32.mrf.mxu0
  %v126 = vadd.f32 %v82, %v125
  %127 = vmatmul.f32.gmra.mxu0 %v57
  %v128 = vpop.f32.mrf.mxu0
  %v129 = vadd.f32 %v82, %v128
  %130 = vmatmul.f32.gmra.mxu0 %v58
  %v131 = vpop.f32.mrf.mxu0
  %v132 = vadd.f32 %v82, %v131
  %133 = vmatmul.f32.gmra.mxu0 %v59
  %v134 = vpop.f32.mrf.mxu0
  %v135 = vadd.f32 %v82, %v134
  %136 = vmatmul.f32.gmra.mxu0 %v60
  %v137 = vpop.f32.mrf.mxu0
  %v138 = vadd.f32 %v82, %v137
  %139 = vmatmul.f32.gmra.mxu0 %v61
  %v140 = vpop.f32.mrf.mxu0
  %v141 = vadd.f32 %v82, %v140
  %142 = vmatmul.f32.gmra.mxu0 %v62
  %v143 = vpop.f32.mrf.mxu0
  %v144 = vadd.f32 %v82, %v143
  %145 = vmatmul.f32.gmra.mxu0 %v63
  %v146 = vpop.f32.mrf.mxu0
  %v147 = vadd.f32 %v82, %v146
  %148 = vdwg.mxu0
  %v149 = vpack.c.bf16 %v105, %v102
  %v150 = vpack.c.bf16 %v111, %v108
  %v151 = vpack.c.bf16 %v117, %v114
  %v152 = vpack.c.bf16 %v123, %v120
  %v153 = vpack.c.bf16 %v129, %v126
  %v154 = vpack.c.bf16 %v135, %v132
  %v155 = vpack.c.bf16 %v141, %v138
  %v156 = vpack.c.bf16 %v147, %v144
  %v173 = vunpack.c.l.b16 %v32
  %v174 = vunpack.c.l.b16 %v33
  %v175 = vunpack.c.l.b16 %v34
  %v176 = vunpack.c.l.b16 %v35
  %v177 = vunpack.c.l.b16 %v36
  %v178 = vunpack.c.l.b16 %v37
  %v179 = vunpack.c.l.b16 %v38
  %v180 = vunpack.c.l.b16 %v39
  %v181 = vunpack.c.l.b16 %v40
  %v182 = vunpack.c.l.b16 %v41
  %v183 = vunpack.c.l.b16 %v42
  %v184 = vunpack.c.l.b16 %v43
  %v185 = vunpack.c.l.b16 %v44
  %v186 = vunpack.c.l.b16 %v45
  %v187 = vunpack.c.l.b16 %v46
  %v188 = vunpack.c.l.b16 %v47
  %v189 = vpack.c.b16 %v174, %v173
  %v190 = vpack.c.b16 %v176, %v175
  %v191 = vpack.c.b16 %v178, %v177
  %v192 = vpack.c.b16 %v180, %v179
  %v193 = vpack.c.b16 %v182, %v181
  %v194 = vpack.c.b16 %v184, %v183
  %v195 = vpack.c.b16 %v186, %v185
  %v196 = vpack.c.b16 %v188, %v187
  %205 = vmatpush.bf16.msra.mxu0 %v156
  %206 = vmatpush.bf16.msra.mxu0 %v155
  %207 = vmatpush.bf16.msra.mxu0 %v154
  %208 = vmatpush.bf16.msra.mxu0 %v153
  %209 = vmatpush.bf16.msra.mxu0 %v152
  %210 = vmatpush.bf16.msra.mxu0 %v151
  %211 = vmatpush.bf16.msra.mxu0 %v150
  %212 = vmatpush.bf16.msra.mxu0 %v149
  %213 = vmatmul.bf16.gmra.mxu0 %v189
  %v214 = vpop.f32.mrf.mxu0
  %v215 = vadd.f32 0.0, %v214
  %v216 = vpop.f32.mrf.mxu0
  %v217 = vadd.f32 0.0, %v216
  %218 = vmatmul.bf16.gmra.mxu0 %v190
  %v219 = vpop.f32.mrf.mxu0
  %v220 = vadd.f32 0.0, %v219
  %v221 = vpop.f32.mrf.mxu0
  %v222 = vadd.f32 0.0, %v221
  %223 = vmatmul.bf16.gmra.mxu0 %v191
  %v224 = vpop.f32.mrf.mxu0
  %v225 = vadd.f32 0.0, %v224
  %v226 = vpop.f32.mrf.mxu0
  %v227 = vadd.f32 0.0, %v226
  %228 = vmatmul.bf16.gmra.mxu0 %v192
  %v229 = vpop.f32.mrf.mxu0
  %v230 = vadd.f32 0.0, %v229
  %v231 = vpop.f32.mrf.mxu0
  %v232 = vadd.f32 0.0, %v231
  %233 = vmatmul.bf16.gmra.mxu0 %v193
  %v234 = vpop.f32.mrf.mxu0
  %v235 = vadd.f32 0.0, %v234
  %v236 = vpop.f32.mrf.mxu0
  %v237 = vadd.f32 0.0, %v236
  %238 = vmatmul.bf16.gmra.mxu0 %v194
  %v239 = vpop.f32.mrf.mxu0
  %v240 = vadd.f32 0.0, %v239
  %v241 = vpop.f32.mrf.mxu0
  %v242 = vadd.f32 0.0, %v241
  %243 = vmatmul.bf16.gmra.mxu0 %v195
  %v244 = vpop.f32.mrf.mxu0
  %v245 = vadd.f32 0.0, %v244
  %v246 = vpop.f32.mrf.mxu0
  %v247 = vadd.f32 0.0, %v246
  %248 = vmatmul.bf16.gmra.mxu0 %v196
  %v249 = vpop.f32.mrf.mxu0
  %v250 = vadd.f32 0.0, %v249
  %v251 = vpop.f32.mrf.mxu0
  %v252 = vadd.f32 0.0, %v251
  %253 = vdwg.mxu0
  %v254 = vmax.f32 %v215, 0.0
  %v255 = vmax.f32 %v217, 0.0
  %v256 = vmax.f32 %v220, 0.0
  %v257 = vmax.f32 %v222, 0.0
  %v258 = vmax.f32 %v225, 0.0
  %v259 = vmax.f32 %v227, 0.0
  %v260 = vmax.f32 %v230, 0.0
  %v261 = vmax.f32 %v232, 0.0
  %v262 = vmax.f32 %v235, 0.0
  %v263 = vmax.f32 %v237, 0.0
  %v264 = vmax.f32 %v240, 0.0
  %v265 = vmax.f32 %v242, 0.0
  %v266 = vmax.f32 %v245, 0.0
  %v267 = vmax.f32 %v247, 0.0
  %v268 = vmax.f32 %v250, 0.0
  %v269 = vmax.f32 %v252, 0.0
  %270 = vst [vmem:[%s8] sm:$0xff] %v254
  %271 = vst [vmem:[%s8 + $0x8] sm:$0xff] %v255
  %272 = vst [vmem:[%s8 + $0x10] sm:$0xff] %v256
  %273 = vst [vmem:[%s8 + $0x18] sm:$0xff] %v257
  %274 = vst [vmem:[%s8 + $0x20] sm:$0xff] %v258
  %275 = vst [vmem:[%s8 + $0x28] sm:$0xff] %v259
  %276 = vst [vmem:[%s8 + $0x30] sm:$0xff] %v260
  %277 = vst [vmem:[%s8 + $0x38] sm:$0xff] %v261
  %278 = vst [vmem:[%s8 + $0x40] sm:$0xff] %v262
  %279 = vst [vmem:[%s8 + $0x48] sm:$0xff] %v263
  %280 = vst [vmem:[%s8 + $0x50] sm:$0xff] %v264
  %281 = vst [vmem:[%s8 + $0x58] sm:$0xff] %v265
  %282 = vst [vmem:[%s8 + $0x60] sm:$0xff] %v266
  %283 = vst [vmem:[%s8 + $0x68] sm:$0xff] %v267
  %284 = vst [vmem:[%s8 + $0x70] sm:$0xff] %v268
  %285 = vst [vmem:[%s8 + $0x78] sm:$0xff] %v269
  %v286 = vld [vmem:[%s4] sm:$0xff]
  %v287 = vld [vmem:[%s4 + $0x8] sm:$0xff]
  %v288 = vld [vmem:[%s4 + $0x10] sm:$0xff]
  %v289 = vld [vmem:[%s4 + $0x18] sm:$0xff]
  %v290 = vld [vmem:[%s4 + $0x20] sm:$0xff]
  %v291 = vld [vmem:[%s4 + $0x28] sm:$0xff]
  %v292 = vld [vmem:[%s4 + $0x30] sm:$0xff]
  %v293 = vld [vmem:[%s4 + $0x38] sm:$0xff]
  %v294 = vld [vmem:[%s4 + $0x40] sm:$0xff]
  %v295 = vld [vmem:[%s4 + $0x48] sm:$0xff]
  %v296 = vld [vmem:[%s4 + $0x50] sm:$0xff]
  %v297 = vld [vmem:[%s4 + $0x58] sm:$0xff]
  %v298 = vld [vmem:[%s4 + $0x60] sm:$0xff]
  %v299 = vld [vmem:[%s4 + $0x68] sm:$0xff]
  %v300 = vld [vmem:[%s4 + $0x70] sm:$0xff]
  %v301 = vld [vmem:[%s4 + $0x78] sm:$0xff]
  %v302 = vld [vmem:[%s5] sm:$0x1]
  %v304 = vperm.slane %v302, 0
  %306 = vmatpush.msra.mxu0 %v301
  %307 = vmatpush.msra.mxu0 %v300
  %308 = vmatpush.msra.mxu0 %v299
  %309 = vmatpush.msra.mxu0 %v298
  %310 = vmatpush.msra.mxu0 %v297
  %311 = vmatpush.msra.mxu0 %v296
  %312 = vmatpush.msra.mxu0 %v295
  %313 = vmatpush.msra.mxu0 %v294
  %314 = vmatpush.msra.mxu0 %v293
  %315 = vmatpush.msra.mxu0 %v292
  %316 = vmatpush.msra.mxu0 %v291
  %317 = vmatpush.msra.mxu0 %v290
  %318 = vmatpush.msra.mxu0 %v289
  %319 = vmatpush.msra.mxu0 %v288
  %320 = vmatpush.msra.mxu0 %v287
  %321 = vmatpush.msra.mxu0 %v286
  %322 = vmatmul.f32.gmra.mxu0 %v254
  %v323 = vpop.f32.mrf.mxu0
  %v324 = vadd.f32 %v304, %v323
  %325 = vmatmul.f32.gmra.mxu0 %v255
  %v326 = vpop.f32.mrf.mxu0
  %v327 = vadd.f32 %v304, %v326
  %328 = vmatmul.f32.gmra.mxu0 %v256
  %v329 = vpop.f32.mrf.mxu0
  %v330 = vadd.f32 %v304, %v329
  %331 = vmatmul.f32.gmra.mxu0 %v257
  %v332 = vpop.f32.mrf.mxu0
  %v333 = vadd.f32 %v304, %v332
  %334 = vmatmul.f32.gmra.mxu0 %v258
  %v335 = vpop.f32.mrf.mxu0
  %v336 = vadd.f32 %v304, %v335
  %337 = vmatmul.f32.gmra.mxu0 %v259
  %v338 = vpop.f32.mrf.mxu0
  %v339 = vadd.f32 %v304, %v338
  %340 = vmatmul.f32.gmra.mxu0 %v260
  %v341 = vpop.f32.mrf.mxu0
  %v342 = vadd.f32 %v304, %v341
  %343 = vmatmul.f32.gmra.mxu0 %v261
  %v344 = vpop.f32.mrf.mxu0
  %v345 = vadd.f32 %v304, %v344
  %346 = vmatmul.f32.gmra.mxu0 %v262
  %v347 = vpop.f32.mrf.mxu0
  %v348 = vadd.f32 %v304, %v347
  %349 = vmatmul.f32.gmra.mxu0 %v263
  %v350 = vpop.f32.mrf.mxu0
  %v351 = vadd.f32 %v304, %v350
  %352 = vmatmul.f32.gmra.mxu0 %v264
  %v353 = vpop.f32.mrf.mxu0
  %v354 = vadd.f32 %v304, %v353
  %355 = vmatmul.f32.gmra.mxu0 %v265
  %v356 = vpop.f32.mrf.mxu0
  %v357 = vadd.f32 %v304, %v356
  %358 = vmatmul.f32.gmra.mxu0 %v266
  %v359 = vpop.f32.mrf.mxu0
  %v360 = vadd.f32 %v304, %v359
  %361 = vmatmul.f32.gmra.mxu0 %v267
  %v362 = vpop.f32.mrf.mxu0
  %v363 = vadd.f32 %v304, %v362
  %364 = vmatmul.f32.gmra.mxu0 %v268
  %v365 = vpop.f32.mrf.mxu0
  %v366 = vadd.f32 %v304, %v365
  %367 = vmatmul.f32.gmra.mxu0 %v269
  %v368 = vpop.f32.mrf.mxu0
  %v369 = vadd.f32 %v304, %v368
  %370 = vdwg.mxu0
  %v371 = vpack.c.bf16 %v327, %v324
  %v372 = vpack.c.bf16 %v333, %v330
  %v373 = vpack.c.bf16 %v339, %v336
  %v374 = vpack.c.bf16 %v345, %v342
  %v375 = vpack.c.bf16 %v351, %v348
  %v376 = vpack.c.bf16 %v357, %v354
  %v377 = vpack.c.bf16 %v363, %v360
  %v378 = vpack.c.bf16 %v369, %v366
  %379 = vmatpush.bf16.msra.mxu0 %v378
  %380 = vmatpush.bf16.msra.mxu0 %v377
  %381 = vmatpush.bf16.msra.mxu0 %v376
  %382 = vmatpush.bf16.msra.mxu0 %v375
  %383 = vmatpush.bf16.msra.mxu0 %v374
  %384 = vmatpush.bf16.msra.mxu0 %v373
  %385 = vmatpush.bf16.msra.mxu0 %v372
  %386 = vmatpush.bf16.msra.mxu0 %v371
  %387 = vmatmul.bf16.gmra.mxu0 %v189
  %v388 = vpop.f32.mrf.mxu0
  %v389 = vadd.f32 0.0, %v388
  %v390 = vpop.f32.mrf.mxu0
  %v391 = vadd.f32 0.0, %v390
  %392 = vmatmul.bf16.gmra.mxu0 %v190
  %v393 = vpop.f32.mrf.mxu0
  %v394 = vadd.f32 0.0, %v393
  %v395 = vpop.f32.mrf.mxu0
  %v396 = vadd.f32 0.0, %v395
  %397 = vmatmul.bf16.gmra.mxu0 %v191
  %v398 = vpop.f32.mrf.mxu0
  %v399 = vadd.f32 0.0, %v398
  %v400 = vpop.f32.mrf.mxu0
  %v401 = vadd.f32 0.0, %v400
  %402 = vmatmul.bf16.gmra.mxu0 %v192
  %v403 = vpop.f32.mrf.mxu0
  %v404 = vadd.f32 0.0, %v403
  %v405 = vpop.f32.mrf.mxu0
  %v406 = vadd.f32 0.0, %v405
  %407 = vmatmul.bf16.gmra.mxu0 %v193
  %v408 = vpop.f32.mrf.mxu0
  %v409 = vadd.f32 0.0, %v408
  %v410 = vpop.f32.mrf.mxu0
  %v411 = vadd.f32 0.0, %v410
  %412 = vmatmul.bf16.gmra.mxu0 %v194
  %v413 = vpop.f32.mrf.mxu0
  %v414 = vadd.f32 0.0, %v413
  %v415 = vpop.f32.mrf.mxu0
  %v416 = vadd.f32 0.0, %v415
  %417 = vmatmul.bf16.gmra.mxu0 %v195
  %v418 = vpop.f32.mrf.mxu0
  %v419 = vadd.f32 0.0, %v418
  %v420 = vpop.f32.mrf.mxu0
  %v421 = vadd.f32 0.0, %v420
  %422 = vmatmul.bf16.gmra.mxu0 %v196
  %v423 = vpop.f32.mrf.mxu0
  %v424 = vadd.f32 0.0, %v423
  %v425 = vpop.f32.mrf.mxu0
  %v426 = vadd.f32 0.0, %v425
  %427 = vdwg.mxu0
  %v428 = vmax.f32 %v389, 0.0
  %v429 = vmax.f32 %v391, 0.0
  %v430 = vmax.f32 %v394, 0.0
  %v431 = vmax.f32 %v396, 0.0
  %v432 = vmax.f32 %v399, 0.0
  %v433 = vmax.f32 %v401, 0.0
  %v434 = vmax.f32 %v404, 0.0
  %v435 = vmax.f32 %v406, 0.0
  %v436 = vmax.f32 %v409, 0.0
  %v437 = vmax.f32 %v411, 0.0
  %v438 = vmax.f32 %v414, 0.0
  %v439 = vmax.f32 %v416, 0.0
  %v440 = vmax.f32 %v419, 0.0
  %v441 = vmax.f32 %v421, 0.0
  %v442 = vmax.f32 %v424, 0.0
  %v443 = vmax.f32 %v426, 0.0
  %444 = vst [vmem:[%s9] sm:$0xff] %v428
  %445 = vst [vmem:[%s9 + $0x8] sm:$0xff] %v429
  %446 = vst [vmem:[%s9 + $0x10] sm:$0xff] %v430
  %447 = vst [vmem:[%s9 + $0x18] sm:$0xff] %v431
  %448 = vst [vmem:[%s9 + $0x20] sm:$0xff] %v432
  %449 = vst [vmem:[%s9 + $0x28] sm:$0xff] %v433
  %450 = vst [vmem:[%s9 + $0x30] sm:$0xff] %v434
  %451 = vst [vmem:[%s9 + $0x38] sm:$0xff] %v435
  %452 = vst [vmem:[%s9 + $0x40] sm:$0xff] %v436
  %453 = vst [vmem:[%s9 + $0x48] sm:$0xff] %v437
  %454 = vst [vmem:[%s9 + $0x50] sm:$0xff] %v438
  %455 = vst [vmem:[%s9 + $0x58] sm:$0xff] %v439
  %456 = vst [vmem:[%s9 + $0x60] sm:$0xff] %v440
  %457 = vst [vmem:[%s9 + $0x68] sm:$0xff] %v441
  %458 = vst [vmem:[%s9 + $0x70] sm:$0xff] %v442
  %459 = vst [vmem:[%s9 + $0x78] sm:$0xff] %v443
  %v460 = vld [vmem:[%s6] sm:$0xff]
  %v461 = vld [vmem:[%s6 + $0x8] sm:$0xff]
  %v462 = vld [vmem:[%s6 + $0x10] sm:$0xff]
  %v463 = vld [vmem:[%s6 + $0x18] sm:$0xff]
  %v464 = vld [vmem:[%s6 + $0x20] sm:$0xff]
  %v465 = vld [vmem:[%s6 + $0x28] sm:$0xff]
  %v466 = vld [vmem:[%s6 + $0x30] sm:$0xff]
  %v467 = vld [vmem:[%s6 + $0x38] sm:$0xff]
  %v468 = vld [vmem:[%s6 + $0x40] sm:$0xff]
  %v469 = vld [vmem:[%s6 + $0x48] sm:$0xff]
  %v470 = vld [vmem:[%s6 + $0x50] sm:$0xff]
  %v471 = vld [vmem:[%s6 + $0x58] sm:$0xff]
  %v472 = vld [vmem:[%s6 + $0x60] sm:$0xff]
  %v473 = vld [vmem:[%s6 + $0x68] sm:$0xff]
  %v474 = vld [vmem:[%s6 + $0x70] sm:$0xff]
  %v475 = vld [vmem:[%s6 + $0x78] sm:$0xff]
  %v476 = vld [vmem:[%s7] sm:$0x1]
  %v478 = vperm.slane %v476, 0
  %480 = vmatpush.msra.mxu0 %v475
  %481 = vmatpush.msra.mxu0 %v474
  %482 = vmatpush.msra.mxu0 %v473
  %483 = vmatpush.msra.mxu0 %v472
  %484 = vmatpush.msra.mxu0 %v471
  %485 = vmatpush.msra.mxu0 %v470
  %486 = vmatpush.msra.mxu0 %v469
  %487 = vmatpush.msra.mxu0 %v468
  %488 = vmatpush.msra.mxu0 %v467
  %489 = vmatpush.msra.mxu0 %v466
  %490 = vmatpush.msra.mxu0 %v465
  %491 = vmatpush.msra.mxu0 %v464
  %492 = vmatpush.msra.mxu0 %v463
  %493 = vmatpush.msra.mxu0 %v462
  %494 = vmatpush.msra.mxu0 %v461
  %495 = vmatpush.msra.mxu0 %v460
  %496 = vmatmul.f32.gmra.mxu0 %v428
  %v497 = vpop.f32.mrf.mxu0
  %v498 = vadd.f32 %v478, %v497
  %499 = vmatmul.f32.gmra.mxu0 %v429
  %v500 = vpop.f32.mrf.mxu0
  %v501 = vadd.f32 %v478, %v500
  %502 = vmatmul.f32.gmra.mxu0 %v430
  %v503 = vpop.f32.mrf.mxu0
  %v504 = vadd.f32 %v478, %v503
  %505 = vmatmul.f32.gmra.mxu0 %v431
  %v506 = vpop.f32.mrf.mxu0
  %v507 = vadd.f32 %v478, %v506
  %508 = vmatmul.f32.gmra.mxu0 %v432
  %v509 = vpop.f32.mrf.mxu0
  %v510 = vadd.f32 %v478, %v509
  %511 = vmatmul.f32.gmra.mxu0 %v433
  %v512 = vpop.f32.mrf.mxu0
  %v513 = vadd.f32 %v478, %v512
  %514 = vmatmul.f32.gmra.mxu0 %v434
  %v515 = vpop.f32.mrf.mxu0
  %v516 = vadd.f32 %v478, %v515
  %517 = vmatmul.f32.gmra.mxu0 %v435
  %v518 = vpop.f32.mrf.mxu0
  %v519 = vadd.f32 %v478, %v518
  %520 = vmatmul.f32.gmra.mxu0 %v436
  %v521 = vpop.f32.mrf.mxu0
  %v522 = vadd.f32 %v478, %v521
  %523 = vmatmul.f32.gmra.mxu0 %v437
  %v524 = vpop.f32.mrf.mxu0
  %v525 = vadd.f32 %v478, %v524
  %526 = vmatmul.f32.gmra.mxu0 %v438
  %v527 = vpop.f32.mrf.mxu0
  %v528 = vadd.f32 %v478, %v527
  %529 = vmatmul.f32.gmra.mxu0 %v439
  %v530 = vpop.f32.mrf.mxu0
  %v531 = vadd.f32 %v478, %v530
  %532 = vmatmul.f32.gmra.mxu0 %v440
  %v533 = vpop.f32.mrf.mxu0
  %v534 = vadd.f32 %v478, %v533
  %535 = vmatmul.f32.gmra.mxu0 %v441
  %v536 = vpop.f32.mrf.mxu0
  %v537 = vadd.f32 %v478, %v536
  %538 = vmatmul.f32.gmra.mxu0 %v442
  %v539 = vpop.f32.mrf.mxu0
  %v540 = vadd.f32 %v478, %v539
  %541 = vmatmul.f32.gmra.mxu0 %v443
  %v542 = vpop.f32.mrf.mxu0
  %v543 = vadd.f32 %v478, %v542
  %544 = vdwg.mxu0
  %v545 = vpack.c.bf16 %v501, %v498
  %v546 = vpack.c.bf16 %v507, %v504
  %v547 = vpack.c.bf16 %v513, %v510
  %v548 = vpack.c.bf16 %v519, %v516
  %v549 = vpack.c.bf16 %v525, %v522
  %v550 = vpack.c.bf16 %v531, %v528
  %v551 = vpack.c.bf16 %v537, %v534
  %v552 = vpack.c.bf16 %v543, %v540
  %553 = vmatpush.bf16.msra.mxu0 %v552
  %554 = vmatpush.bf16.msra.mxu0 %v551
  %555 = vmatpush.bf16.msra.mxu0 %v550
  %556 = vmatpush.bf16.msra.mxu0 %v549
  %557 = vmatpush.bf16.msra.mxu0 %v548
  %558 = vmatpush.bf16.msra.mxu0 %v547
  %559 = vmatpush.bf16.msra.mxu0 %v546
  %560 = vmatpush.bf16.msra.mxu0 %v545
  %561 = vmatmul.bf16.gmra.mxu0 %v189
  %v562 = vpop.f32.mrf.mxu0
  %v563 = vadd.f32 0.0, %v562
  %v564 = vpop.f32.mrf.mxu0
  %v565 = vadd.f32 0.0, %v564
  %566 = vmatmul.bf16.gmra.mxu0 %v190
  %v567 = vpop.f32.mrf.mxu0
  %v568 = vadd.f32 0.0, %v567
  %v569 = vpop.f32.mrf.mxu0
  %v570 = vadd.f32 0.0, %v569
  %571 = vmatmul.bf16.gmra.mxu0 %v191
  %v572 = vpop.f32.mrf.mxu0
  %v573 = vadd.f32 0.0, %v572
  %v574 = vpop.f32.mrf.mxu0
  %v575 = vadd.f32 0.0, %v574
  %576 = vmatmul.bf16.gmra.mxu0 %v192
  %v577 = vpop.f32.mrf.mxu0
  %v578 = vadd.f32 0.0, %v577
  %v579 = vpop.f32.mrf.mxu0
  %v580 = vadd.f32 0.0, %v579
  %581 = vmatmul.bf16.gmra.mxu0 %v193
  %v582 = vpop.f32.mrf.mxu0
  %v583 = vadd.f32 0.0, %v582
  %v584 = vpop.f32.mrf.mxu0
  %v585 = vadd.f32 0.0, %v584
  %586 = vmatmul.bf16.gmra.mxu0 %v194
  %v587 = vpop.f32.mrf.mxu0
  %v588 = vadd.f32 0.0, %v587
  %v589 = vpop.f32.mrf.mxu0
  %v590 = vadd.f32 0.0, %v589
  %591 = vmatmul.bf16.gmra.mxu0 %v195
  %v592 = vpop.f32.mrf.mxu0
  %v593 = vadd.f32 0.0, %v592
  %v594 = vpop.f32.mrf.mxu0
  %v595 = vadd.f32 0.0, %v594
  %596 = vmatmul.bf16.gmra.mxu0 %v196
  %v597 = vpop.f32.mrf.mxu0
  %v598 = vadd.f32 0.0, %v597
  %v599 = vpop.f32.mrf.mxu0
  %v600 = vadd.f32 0.0, %v599
  %601 = vdwg.mxu0
  %v602 = vmax.f32 %v563, 0.0
  %v603 = vmax.f32 %v565, 0.0
  %v604 = vmax.f32 %v568, 0.0
  %v605 = vmax.f32 %v570, 0.0
  %v606 = vmax.f32 %v573, 0.0
  %v607 = vmax.f32 %v575, 0.0
  %v608 = vmax.f32 %v578, 0.0
  %v609 = vmax.f32 %v580, 0.0
  %v610 = vmax.f32 %v583, 0.0
  %v611 = vmax.f32 %v585, 0.0
  %v612 = vmax.f32 %v588, 0.0
  %v613 = vmax.f32 %v590, 0.0
  %v614 = vmax.f32 %v593, 0.0
  %v615 = vmax.f32 %v595, 0.0
  %v616 = vmax.f32 %v598, 0.0
  %v617 = vmax.f32 %v600, 0.0
  %618 = vst [vmem:[%s10] sm:$0xff] %v602
  %619 = vst [vmem:[%s10 + $0x8] sm:$0xff] %v603
  %620 = vst [vmem:[%s10 + $0x10] sm:$0xff] %v604
  %621 = vst [vmem:[%s10 + $0x18] sm:$0xff] %v605
  %622 = vst [vmem:[%s10 + $0x20] sm:$0xff] %v606
  %623 = vst [vmem:[%s10 + $0x28] sm:$0xff] %v607
  %624 = vst [vmem:[%s10 + $0x30] sm:$0xff] %v608
  %625 = vst [vmem:[%s10 + $0x38] sm:$0xff] %v609
  %626 = vst [vmem:[%s10 + $0x40] sm:$0xff] %v610
  %627 = vst [vmem:[%s10 + $0x48] sm:$0xff] %v611
  %628 = vst [vmem:[%s10 + $0x50] sm:$0xff] %v612
  %629 = vst [vmem:[%s10 + $0x58] sm:$0xff] %v613
  %630 = vst [vmem:[%s10 + $0x60] sm:$0xff] %v614
  %631 = vst [vmem:[%s10 + $0x68] sm:$0xff] %v615
  %632 = vst [vmem:[%s10 + $0x70] sm:$0xff] %v616
  %633 = vst [vmem:[%s10 + $0x78] sm:$0xff] %v617
  // Predicated region
  $region34: #{gcn3_forward.1} parent=0 // pred_check
    _
  $region35: #{gcn3_forward.1} parent=0 // pred_check_branch
    %635 = sbr.rel (0) target = $region37
  $region36: #{gcn3_forward.1} parent=0 // pred_region
    _
  $region37: #{gcn3_forward.1} parent=0 // pred_fallthru
    _
  // Predicated region
  $region38: #{gcn3_forward.1} parent=0 // pred_check
    _
  $region39: #{gcn3_forward.1} parent=0 // pred_check_branch
    %637 = sbr.rel (0) target = $region41
  $region40: #{gcn3_forward.1} parent=0 // pred_region
    _
  $region41: #{gcn3_forward.1} parent=0 // pred_fallthru
    _
  // Predicated region
  $region42: #{gcn3_forward.1} parent=0 // pred_check
    _
  $region43: #{gcn3_forward.1} parent=0 // pred_check_branch
    %639 = sbr.rel (0) target = $region45
  $region44: #{gcn3_forward.1} parent=0 // pred_region
    _
  $region45: #{gcn3_forward.1} parent=0 // pred_fallthru
    _
  // Predicated region
  $region46: #{gcn3_forward.1} parent=0 // pred_check
    _
  $region47: #{gcn3_forward.1} parent=0 // pred_check_branch
    %641 = sbr.rel (0) target = $region49
  $region48: #{gcn3_forward.1} parent=0 // pred_region
    _
  $region49: #{gcn3_forward.1} parent=0 // pred_fallthru
    _
  // Predicated region
  $region50: #{gcn3_forward.1} parent=0 // pred_check
    _
  $region51: #{gcn3_forward.1} parent=0 // pred_check_branch
    %643 = sbr.rel (0) target = $region53
  $region52: #{gcn3_forward.1} parent=0 // pred_region
    _
  $region53: #{gcn3_forward.1} parent=0 // pred_fallthru
    _
  // Predicated region
  $region54: #{gcn3_forward.1} parent=0 // pred_check
    _
  $region55: #{gcn3_forward.1} parent=0 // pred_check_branch
    %645 = sbr.rel (0) target = $region57
  $region56: #{gcn3_forward.1} parent=0 // pred_region
    _
  $region57: #{gcn3_forward.1} parent=0 // pred_fallthru
    _

</llo_original>
